<compile_context>
chip_gen: v7x
topology: tpu7x:2x2x1
jax: 0.10.0
libtpu: 0.0.40
codegen_flags: <defaults>
</compile_context>

<pallas_src>
import functools
import math

import jax
import jax.numpy as jnp
from jax import lax
from jax.experimental import pallas as pl
from jax.experimental.pallas import tpu as pltpu


def _round_up(a, b):
    return ((a + b - 1) // b) * b


def _sinusoidal_pos_emb_kernel(x_ref, tab_ref, o_ref, *, k, out_dim):
    # x_ref:   (TB, k)           k timesteps packed per output row
    # tab_ref: (2, k*out_dim)    row 0: freqs tiled k times; row 1: phase (0 | pi/2) tiled
    # o_ref:   (TB, k*out_dim)   lane-dense embedding block
    x = x_ref[...].astype(jnp.float32)              # (TB, k)
    fr = tab_ref[0:1, :]                            # (1, KD)
    ph = tab_ref[1:2, :]                            # (1, KD)

    if k == 1:
        xe = x                                      # (TB, 1) lane-broadcasts
    else:
        # Expand x lane-wise so lanes [j*out_dim, (j+1)*out_dim) carry x[:, j].
        lane = lax.broadcasted_iota(jnp.int32, (x.shape[0], k * out_dim), 1)
        xe = jnp.broadcast_to(x[:, 0:1], (x.shape[0], k * out_dim))
        for j in range(1, k):
            xe = jnp.where(lane >= j * out_dim, x[:, j:j + 1], xe)

    # Single transcendental per element: cos(a) = sin(a + pi/2).
    o_ref[...] = jnp.sin(xe * fr + ph).astype(o_ref.dtype)


def sinusoidal_pos_emb(x, dim, *, out_dtype=jnp.float32):
    """x: (B,) timesteps. Returns (B, 2*(dim//2)) embeddings ((B, dim) for even dim)."""
    B = x.shape[0]
    half_dim = dim // 2
    out_dim = 2 * half_dim
    # NOTE: half_dim == 1 (dim of 2 or 3) divides by zero, exactly like the
    # torch module; such dims are unsupported here as well.
    emb_scale = math.log(10000.0) / (half_dim - 1)

    # Lane packing factor: pack k batch rows per output row when out_dim < 128.
    if out_dim < 128 and 128 % out_dim == 0:
        k = 128 // out_dim
    else:
        k = 1
    KD = k * out_dim

    # Resident frequency/phase table, one (2, KD) block, constant index_map.
    freqs_half = jnp.exp(-emb_scale * jnp.arange(half_dim, dtype=jnp.float32))
    freqs_row = jnp.tile(jnp.concatenate([freqs_half, freqs_half]), k)
    phase_row = jnp.tile(
        jnp.concatenate([jnp.zeros((half_dim,), jnp.float32),
                         jnp.full((half_dim,), 0.5 * math.pi, jnp.float32)]), k)
    table = jnp.stack([freqs_row, phase_row])       # (2, KD)

    # Packed batch rows; tile rows in multiples of 8, cap 1024, and keep >= 2
    # grid steps when there is enough work (v7x: 2 TensorCores per chip).
    R = pl.cdiv(B, k)
    R8 = _round_up(R, 8)
    if R8 >= 16:
        TB = min(1024, _round_up(pl.cdiv(R8, 2), 8))
    else:
        TB = R8
    Rp = _round_up(R8, TB)

    # x_packed[r, j] = x[r*k + j] (zero padded).
    x_flat = jnp.pad(x.astype(jnp.float32), (0, Rp * k - B))
    x_packed = x_flat.reshape(Rp, k)

    kernel = functools.partial(_sinusoidal_pos_emb_kernel, k=k, out_dim=out_dim)

    out_bytes = Rp * KD * jnp.dtype(out_dtype).itemsize
    cost = pl.CostEstimate(
        flops=2 * Rp * KD,
        transcendentals=Rp * KD,
        bytes_accessed=4 * Rp * k + 4 * 2 * KD + out_bytes,
    )

    out = pl.pallas_call(
        kernel,
        out_shape=jax.ShapeDtypeStruct((Rp, KD), out_dtype),
        grid_spec=pltpu.PrefetchScalarGridSpec(
            num_scalar_prefetch=0,
            grid=(Rp // TB,),
            in_specs=[
                pl.BlockSpec((TB, k), lambda i: (i, 0)),   # batch-row tile
                pl.BlockSpec((2, KD), lambda i: (0, 0)),   # resident freq/phase table
            ],
            out_specs=pl.BlockSpec((TB, KD), lambda i: (i, 0)),
        ),
        compiler_params=pltpu.CompilerParams(
            dimension_semantics=("parallel",),
        ),
        cost_estimate=cost,
    )(x_packed, table)

    # Unpack: row r, lanes [j*out_dim:(j+1)*out_dim] == embedding of x[r*k + j].
    return out.reshape(Rp * k, out_dim)[:B]


if __name__ == "__main__":
    key = jax.random.PRNGKey(0)
    B, dim = 2, 32
    # Timesteps like a diffusion schedule would produce.
    x = jax.random.uniform(key, (B,), dtype=jnp.float32, minval=0.0, maxval=999.0)

    y = sinusoidal_pos_emb(x, dim)
    y = jax.block_until_ready(y)

    # Plain-JAX reference (same math as the torch forward: cat(sin, cos)).
    half = dim // 2
    scale = math.log(10000.0) / (half - 1)
    freqs = jnp.exp(-scale * jnp.arange(half, dtype=jnp.float32))
    ang = x[:, None] * freqs[None, :]
    ref = jnp.concatenate([jnp.sin(ang), jnp.cos(ang)], axis=-1)

    assert y.shape == (B, dim), f"bad shape {y.shape}"
    # Tolerance 2e-3: the sin(a + pi/2) rewrite plus f32 range reduction at
    # t ~ 1e3 rad gives ~1e-4-level differences vs. a direct cos; real layout
    # or packing bugs would show O(1) errors.
    assert jnp.allclose(y, ref, atol=2e-3, rtol=0.0), "mismatch vs reference"

    print("KERNEL_OK")
</pallas_src>

<mosaic_0001>
module attributes {stable_mosaic.version = 11 : i64} {
  func.func @_sinusoidal_pos_emb_kernel(%arg0: i32, %arg1: memref<8x4xf32, #tpu.memory_space<vmem>>, %arg2: memref<2x128xf32, #tpu.memory_space<vmem>>, %arg3: memref<8x128xf32, #tpu.memory_space<vmem>>) attributes {dimension_semantics = [#tpu.dimension_semantics<parallel>], iteration_bounds = array<i64: 1>, scalar_prefetch = 0 : i64, scratch_operands = 0 : i64, tpu.core_type = #tpu.core_type<tc>, window_params = [{transform_indices = @transform_0, window_bounds = array<i64: 8, 4>}, {pipeline_mode = #tpu.pipeline_mode<synchronous>, transform_indices = @transform_1, window_bounds = array<i64: 2, 128>}, {transform_indices = @transform_2, window_bounds = array<i64: 8, 128>}]} {
    %c0 = arith.constant 0 : index
    %c0_0 = arith.constant 0 : index
    %0 = vector.load %arg1[%c0, %c0_0] : memref<8x4xf32, #tpu.memory_space<vmem>>, vector<8x4xf32>
    %c0_1 = arith.constant 0 : index
    %c0_2 = arith.constant 0 : index
    %1 = vector.load %arg2[%c0_1, %c0_2] : memref<2x128xf32, #tpu.memory_space<vmem>>, vector<1x128xf32>
    %c1 = arith.constant 1 : index
    %c0_3 = arith.constant 0 : index
    %2 = vector.load %arg2[%c1, %c0_3] : memref<2x128xf32, #tpu.memory_space<vmem>>, vector<1x128xf32>
    %3 = tpu.iota {dimensions = array<i32: 1>} : vector<8x128xi32>
    %4 = vector.extract_strided_slice %0 {offsets = [0, 0], sizes = [8, 1], strides = [1, 1]} : vector<8x4xf32> to vector<8x1xf32>
    %5 = vector.shape_cast %4 : vector<8x1xf32> to vector<8x1xf32>
    %6 = vector.broadcast %5 : vector<8x1xf32> to vector<8x128xf32>
    %c32_i32 = arith.constant 32 : i32
    %7 = vector.broadcast %c32_i32 : i32 to vector<8x128xi32>
    %8 = arith.cmpi sge, %3, %7 : vector<8x128xi32>
    %9 = vector.extract_strided_slice %0 {offsets = [0, 1], sizes = [8, 1], strides = [1, 1]} : vector<8x4xf32> to vector<8x1xf32>
    %10 = vector.shape_cast %9 : vector<8x1xf32> to vector<8x1xf32>
    %11 = vector.broadcast %10 : vector<8x1xf32> to vector<8x128xf32>
    %12 = arith.select %8, %11, %6 : vector<8x128xi1>, vector<8x128xf32>
    %c64_i32 = arith.constant 64 : i32
    %13 = vector.broadcast %c64_i32 : i32 to vector<8x128xi32>
    %14 = arith.cmpi sge, %3, %13 : vector<8x128xi32>
    %15 = vector.extract_strided_slice %0 {offsets = [0, 2], sizes = [8, 1], strides = [1, 1]} : vector<8x4xf32> to vector<8x1xf32>
    %16 = vector.shape_cast %15 : vector<8x1xf32> to vector<8x1xf32>
    %17 = vector.broadcast %16 : vector<8x1xf32> to vector<8x128xf32>
    %18 = arith.select %14, %17, %12 : vector<8x128xi1>, vector<8x128xf32>
    %c96_i32 = arith.constant 96 : i32
    %19 = vector.broadcast %c96_i32 : i32 to vector<8x128xi32>
    %20 = arith.cmpi sge, %3, %19 : vector<8x128xi32>
    %21 = vector.extract_strided_slice %0 {offsets = [0, 3], sizes = [8, 1], strides = [1, 1]} : vector<8x4xf32> to vector<8x1xf32>
    %22 = vector.shape_cast %21 : vector<8x1xf32> to vector<8x1xf32>
    %23 = vector.broadcast %22 : vector<8x1xf32> to vector<8x128xf32>
    %24 = arith.select %20, %23, %18 : vector<8x128xi1>, vector<8x128xf32>
    %25 = vector.broadcast %1 : vector<1x128xf32> to vector<8x128xf32>
    %26 = arith.mulf %24, %25 : vector<8x128xf32>
    %27 = vector.broadcast %2 : vector<1x128xf32> to vector<8x128xf32>
    %28 = arith.addf %26, %27 : vector<8x128xf32>
    %29 = math.sin %28 : vector<8x128xf32>
    %c0_4 = arith.constant 0 : index
    %c0_5 = arith.constant 0 : index
    %30 = vector.load %arg3[%c0_4, %c0_5] : memref<8x128xf32, #tpu.memory_space<vmem>>, vector<8x128xf32>
    tpu.vector_store %arg3[%c0_4, %c0_5], %29 {strides = array<i32>} : memref<8x128xf32, #tpu.memory_space<vmem>>, vector<8x128xf32>,
    return
  }
  func.func @transform_0(%arg0: i32) -> (i32, i32) {
    %c0_i32 = arith.constant 0 : i32
    %c0_i32_0 = arith.constant 0 : i32
    return %arg0, %c0_i32 : i32, i32
  }
  func.func @transform_1(%arg0: i32) -> (i32, i32) {
    %c0_i32 = arith.constant 0 : i32
    %c0_i32_0 = arith.constant 0 : i32
    %c0_i32_1 = arith.constant 0 : i32
    return %c0_i32, %c0_i32_0 : i32, i32
  }
  func.func @transform_2(%arg0: i32) -> (i32, i32) {
    %c0_i32 = arith.constant 0 : i32
    %c0_i32_0 = arith.constant 0 : i32
    return %arg0, %c0_i32 : i32, i32
  }
}

</mosaic_0001>

<llo_original>
// kernel: tpu_custom_call.1
$region0: #{tpu_custom_call.1}
  #allocation0 [shape = 'u32[]', space=smem, size = 0x4, offset = 0x4, fixed_abs, tag = 'smem constant byte address 0x4 - core index']
  #allocation1 [shape = 'u32[144,128]{1,0:T(1,128)}', space=vmem, size = 0x12000, scoped, tag = 'internal scratch']
  %s0 = inlined_call_operand.vmem [shape: f32[8,4], index: 0, kind: input, shape index: {}]
  %s1 = inlined_call_operand.vmem [shape: f32[2,128], index: 1, kind: input, shape index: {}]
  %s2 = inlined_call_operand.hbm [shape: f32[8,128], index: 2, kind: output, shape index: {}]
  %s3 = sld [smem:[#allocation0]]
  $region18: #{tpu_custom_call.1} parent=0
    _
  %s5 = ssub.s32 1, %s3
  %s6 = scalar_select 0, %s5, %s3
  $region1: #{tpu_custom_call.1} parent=0
    #allocation2 [shape = 'u8[4096]{0}', space=vmem, size = 0x1000, scoped, tag = 'output window, operand 0, single buffered']
    #allocation3 [shape = 's32[1]{0}', space=sflag, size = 0x4, scoped, tag = 'scoped memory for tpu_custom_call.1']
    %7 = vsyncpa [#allocation3], 0
    // Predicated region
    $region2: #{tpu_custom_call.1} parent=1 // pred_check
      _
    $region3: #{tpu_custom_call.1} parent=1 // pred_check_branch
      %9 = sbr.rel (0) target = $region5
    $region4: #{tpu_custom_call.1} parent=1 // pred_region
      _
    $region5: #{tpu_custom_call.1} parent=1 // pred_fallthru
      _
    // Predicated region
    $region6: #{tpu_custom_call.1} parent=1 // pred_check
      _
    $region7: #{tpu_custom_call.1} parent=1 // pred_check_branch
      %11 = sbr.rel (0) target = $region9
    $region8: #{tpu_custom_call.1} parent=1 // pred_region
      _
    $region9: #{tpu_custom_call.1} parent=1 // pred_fallthru
      _
    %v12 = vld [vmem:[%s0] sm:$0xff]
    %v13 = vld [vmem:[%s1] sm:$0x1]
    %v14 = vld [vmem:[%s1 + $0x1] sm:$0x1]
    %v15 = vlaneseq
    %v16 = vand.u32 %v15, 127
    %18 = vset.pattern.permute.xlu0 0
    %19 = vperm.xlu0 %18, %v12
    %v20 = vpop.permute.xlu0 %19
    %vm22 = vcmp.ge.s32.totalorder %v16, 32
    %23 = vset.pattern.permute.xlu0 1
    %24 = vperm.xlu0 %23, %v12
    %v25 = vpop.permute.xlu0 %24
    %v27 = vsel %vm22, %v25, %v20
    %vm28 = vcmp.ge.s32.totalorder %v16, 64
    %29 = vset.pattern.permute.xlu0 2
    %30 = vperm.xlu0 %29, %v12
    %v31 = vpop.permute.xlu0 %30
    %v33 = vsel %vm28, %v31, %v27
    %vm34 = vcmp.ge.s32.totalorder %v16, 96
    %35 = vset.pattern.permute.xlu0 3
    %36 = vperm.xlu0 %35, %v12
    %v37 = vpop.permute.xlu0 %36
    %v39 = vsel %vm34, %v37, %v33
    %v40 = vlaneseq
    %v41 = vshrl.u32 %v40, 7
    %v42 = vsub.s32 0, %v41
    %v43 = vrot.slane %v13, %v42
    %v44 = vmul.f32 %v39, %v43
    %v45 = vlaneseq
    %v46 = vshrl.u32 %v45, 7
    %v47 = vsub.s32 0, %v46
    %v48 = vrot.slane %v14, %v47
    %v49 = vadd.f32 %v44, %v48
    %v50 = vand.u32 2147483647, %v49
    %vm51 = vcmp.le.f32.partialorder %v50, 0.7853982
    %vm52 = vcmp.lt.s32.totalorder %v49, 0
    %v53 = vand.u32 %v49, 2139095040
    %v54 = vshrl.u32 %v53, 23
    %v55 = vsub.s32 %v54, 127
    %v56 = vand.u32 2147483647, %v49
    %v57 = vand.u32 %v56, 8388607
    %v58 = vor.u32 %v57, 8388608
    %v59 = vsub.s32 0, %v58
    %v60 = vadd.s32 %v55, 1
    %vm61 = vcmp.gt.s32.totalorder %v60, 0
    %v62 = vsel %vm61, %v60, 0
    %v63 = vshrl.u32 %v62, 5
    %v64 = vand.u32 %v62, 31
    %v65 = vsub.s32 32, %v64
    %v66 = vshrl.u32 683565275, %v65
    %v67 = vshll.u32 683565275, %v64
    %v68 = vshrl.u32 2475754826, %v65
    %v69 = vor.u32 %v67, %v68
    %v70 = vshll.u32 2475754826, %v64
    %v71 = vshrl.u32 2131351028, %v65
    %v72 = vor.u32 %v70, %v71
    %v73 = vshll.u32 2131351028, %v64
    %v74 = vshrl.u32 2102212464, %v65
    %v75 = vor.u32 %v73, %v74
    %v76 = vshll.u32 2102212464, %v64
    %v77 = vshrl.u32 920167782, %v65
    %v78 = vor.u32 %v76, %v77
    %v79 = vshll.u32 920167782, %v64
    %v80 = vshrl.u32 1326507024, %v65
    %v81 = vor.u32 %v79, %v80
    %vm82 = vcmp.lt.s32.totalorder %v63, 1
    %vm83 = vcmp.lt.s32.totalorder %v63, 2
    %vm84 = vcmp.lt.s32.totalorder %v63, 3
    %vm85 = vcmp.lt.s32.totalorder %v63, 4
    %v86 = vsel %vm82, %v66, %v69
    %v87 = vsel %vm85, %v75, 2102212464
    %v88 = vsel %vm84, %v72, %v87
    %v89 = vsel %vm83, %v86, %v88
    %v90 = vsel %vm82, %v69, %v72
    %v91 = vsel %vm85, %v78, 920167782
    %v92 = vsel %vm84, %v75, %v91
    %v93 = vsel %vm83, %v90, %v92
    %v94 = vsel %vm82, %v72, %v75
    %v95 = vsel %vm85, %v81, 1326507024
    %v96 = vsel %vm84, %v78, %v95
    %v97 = vsel %vm83, %v94, %v96
    %v98 = vshll.u32 %v58, 8
    %v99 = vmul.u32.u64.compose %v98, %v97
    %v100 = vextract.low.u32 %v99
    %v101 = vextract.high.u32 %v99
    %v102 = vmul.u32.u64.compose %v98, %v93
    %v103 = vextract.low.u32 %v102
    %v104 = vextract.high.u32 %v102
    %v105 = vmul.u32 %v98, %v89
    %v106 = vadd.s32 %v101, %v103
    %vm107 = vc.u32 %v101, %v103
    %v108 = vadd.s32 %v104, 1
    %v109 = vsel %vm107, %v108, %v104
    %v110 = vadd.s32 %v105, %v109
    %v111 = vadd.s32 %v110, 536870912
    %v112 = vshrl.u32 %v111, 30
    %v113 = vshll.u32 %v112, 30
    %v114 = vsub.s32 %v110, %v113
    %vm115 = vcmp.lt.s32.totalorder %v114, 0
    %v116 = vsub.s32 0, %v114
    %v117 = vsel %vm115, %v116, %v114
    %v118 = vclz %v117
    %v119 = vsub.s32 %v118, 2
    %vm120 = vcmp.gt.s32.totalorder 0, %v119
    %v121 = vsel %vm120, 0, %v119
    %v122 = vsub.s32 32, %v121
    %v123 = vshll.u32 %v114, %v121
    %v124 = vshrl.u32 %v106, %v122
    %v125 = vor.u32 %v123, %v124
    %v126 = vsub.s32 4294967266, %v121
    %v127 = vadd.s32 %v126, 127
    %v128 = vshll.u32 %v127, 23
    %v129 = vor.u32 4788187, %v128
    %v130 = vand.u32 2147483647, %v129
    %v132 = vcvt.s32.f32 %v125
    %v133 = vmul.f32 %v132, %v130
    %v134 = vxor.u32 %v133, 2147483648
    %v135 = vsel %vm52, %v134, %v133
    %v136 = vsub.s32 4, %v112
    %v137 = vsel %vm52, %v136, %v112
    %v138 = vsel %vm51, %v49, %v135
    %v139 = vsel %vm51, 0, %v137
    %v140 = vcosq.f32.pop %v138
    %v141 = vsinq.f32.pop %v138
    %vm142 = vweird.f32 %v49
    %v143 = vadd.s32 %v139, 3
    %v144 = vand.u32 %v143, 3
    %vm145 = vcmp.lt.s32.totalorder %v144, 2
    %vm146 = vcmp.eq.s32.totalorder %v144, 0
    %v147 = vxor.u32 %v141, 2147483648
    %v148 = vsel %vm146, %v140, %v147
    %vm149 = vcmp.eq.s32.totalorder %v144, 2
    %v150 = vxor.u32 %v140, 2147483648
    %v151 = vsel %vm149, %v150, %v141
    %v152 = vsel %vm145, %v148, %v151
    %v153 = vsel %vm142, nan, %v152
    %154 = vst [vmem:[#allocation2] sm:$0xff] %v153
    // Predicated region
    $region10: #{tpu_custom_call.1} parent=1 // pred_check
      _
    $region11: #{tpu_custom_call.1} parent=1 // pred_check_branch
      %156 = sbr.rel (0) target = $region13
    $region12: #{tpu_custom_call.1} parent=1 // pred_region
      %s158 = ssub.s32 128, 128
      %159 = vsyncadd [#allocation3], %s158
      %s161 = sshll.u32 [#allocation2], 4
      %s162 = int_to_ptr.vmem [resolvable:$true] %s161
      %164 = dma.vmem_to_hbm [thread:$0]  %s162, 128, %s2, [#allocation3]
    $region13: #{tpu_custom_call.1} parent=1 // pred_fallthru
      _
    // Predicated region
    $region14: #{tpu_custom_call.1} parent=1 // pred_check
      _
    $region15: #{tpu_custom_call.1} parent=1 // pred_check_branch
      %166 = sbr.rel (0) target = $region17
    $region16: #{tpu_custom_call.1} parent=1 // pred_region
      %167 = dma.done [#allocation3], 128
    $region17: #{tpu_custom_call.1} parent=1 // pred_fallthru
      _
    %168 = vsyncpa [#allocation3], 1

</llo_original>
